<compile_context>
chip_gen: v7x
topology: tpu7x:2x2x1
jax: 0.10.0
libtpu: 0.0.40
codegen_flags: <defaults>
</compile_context>

<pallas_src>
import jax
import jax.numpy as jnp
from jax.experimental import pallas as pl
from jax.experimental.pallas import tpu as pltpu


# --------------------------------------------------------------------------
# kernels
# --------------------------------------------------------------------------
def _conv_gemm_kernel(p_ref, w_ref, b_ref, o_ref):
    # p_ref: [1, 9*Ci, TN] im2col patches   (K on sublanes, spatial on lanes)
    # w_ref: [Co, 9*Ci]    fused 3x3 weights
    # b_ref: [Co, 1]       bias
    # o_ref: [1, Co, TN]
    acc = jnp.dot(w_ref[...], p_ref[0],
                  preferred_element_type=jnp.float32)      # [Co, TN], MXU
    o_ref[0] = (acc + b_ref[...]).astype(o_ref.dtype)       # bias fused, lane-dense store


def _avgpool_kernel(x4_ref, o_ref):
    # x4_ref: [1, 4, C, TN]  -- the four 2x2 phases of the input
    x4 = x4_ref[0]
    o_ref[0] = ((x4[0] + x4[1] + x4[2] + x4[3]) * 0.25).astype(o_ref.dtype)


# --------------------------------------------------------------------------
# wrappers
# --------------------------------------------------------------------------
def _lane_tile(n):
    """Pick a lane tile: multiple of 128 when possible, else the full extent."""
    if n % 128 == 0:
        for t in (1024, 512, 256, 128):
            if n % t == 0:
                return t
    return n


def _downsample_conv(x, w, b):
    """x: [B, C, H, W]; w: [Co, C, 3, 3]; b: [Co]."""
    B, C, H, W = x.shape
    Co = w.shape[0]

    # F.pad(x, (0,1,0,1)): pad W on the right and H on the bottom by 1.
    x_pad = jnp.pad(x, ((0, 0), (0, 0), (0, 1), (0, 1)))
    Hp, Wp = H + 1, W + 1
    Ho = (Hp - 3) // 2 + 1
    Wo = (Wp - 3) // 2 + 1
    N = Ho * Wo

    # im2col: 9 strided tap slices, concatenated along channels (tap-major,
    # channel-minor).  Pure strided slices -- no gather, no conv in the wrapper.
    taps = []
    for kh in range(3):
        for kw in range(3):
            taps.append(jax.lax.slice(
                x_pad,
                (0, 0, kh, kw),
                (B, C, kh + 2 * (Ho - 1) + 1, kw + 2 * (Wo - 1) + 1),
                (1, 1, 2, 2)))                                   # [B, C, Ho, Wo]
    patches = jnp.concatenate(taps, axis=1).reshape(B, 9 * C, N)  # [B, 9C, N]

    # [Co, Ci, kh, kw] -> [Co, kh, kw, Ci] -> [Co, 9*Ci]  (matches tap order).
    w_mat = jnp.transpose(w, (0, 2, 3, 1)).reshape(Co, 9 * C)
    b_col = b.reshape(Co, 1)

    TN = _lane_tile(N)
    grid = (B, N // TN)

    out = pl.pallas_call(
        _conv_gemm_kernel,
        out_shape=jax.ShapeDtypeStruct((B, Co, N), jnp.float32),
        grid=grid,
        in_specs=[
            pl.BlockSpec((1, 9 * C, TN), lambda bb, j: (bb, 0, j)),  # patches
            pl.BlockSpec((Co, 9 * C), lambda bb, j: (0, 0)),         # weights (resident)
            pl.BlockSpec((Co, 1), lambda bb, j: (0, 0)),             # bias (resident)
        ],
        out_specs=pl.BlockSpec((1, Co, TN), lambda bb, j: (bb, 0, j)),
        compiler_params=pltpu.CompilerParams(
            dimension_semantics=("parallel", "parallel")),
    )(patches, w_mat, b_col)

    return out.reshape(B, Co, Ho, Wo)


def _downsample_avgpool(x):
    """avg_pool2d(x, kernel_size=2, stride=2); assumes even H, W."""
    B, C, H, W = x.shape
    Ho, Wo = H // 2, W // 2
    N = Ho * Wo

    x4 = jnp.stack(
        [x[:, :, 0::2, 0::2], x[:, :, 0::2, 1::2],
         x[:, :, 1::2, 0::2], x[:, :, 1::2, 1::2]],
        axis=1).reshape(B, 4, C, N)

    TN = _lane_tile(N)
    grid = (B, N // TN)

    out = pl.pallas_call(
        _avgpool_kernel,
        out_shape=jax.ShapeDtypeStruct((B, C, N), jnp.float32),
        grid=grid,
        in_specs=[pl.BlockSpec((1, 4, C, TN), lambda bb, j: (bb, 0, 0, j))],
        out_specs=pl.BlockSpec((1, C, TN), lambda bb, j: (bb, 0, j)),
        compiler_params=pltpu.CompilerParams(
            dimension_semantics=("parallel", "parallel")),
    )(x4)

    return out.reshape(B, C, Ho, Wo)


def downsample(x, params, with_conv=True):
    """Forward pass of the PyTorch Downsample module. x: [B, C, H, W] f32."""
    if with_conv:
        return _downsample_conv(x, params["w"], params["b"])
    return _downsample_avgpool(x)


# --------------------------------------------------------------------------
# pure-JAX reference (mirrors the PyTorch forward exactly)
# --------------------------------------------------------------------------
def downsample_ref(x, params, with_conv=True):
    if with_conv:
        x_pad = jnp.pad(x, ((0, 0), (0, 0), (0, 1), (0, 1)))
        out = jax.lax.conv_general_dilated(
            x_pad, params["w"], window_strides=(2, 2), padding="VALID",
            dimension_numbers=("NCHW", "OIHW", "NCHW"),
            precision=jax.lax.Precision.HIGHEST)
        return out + params["b"].reshape(1, -1, 1, 1)
    B, C, H, W = x.shape
    return x.reshape(B, C, H // 2, 2, W // 2, 2).mean(axis=(3, 5))


# --------------------------------------------------------------------------
if __name__ == "__main__":
    key = jax.random.PRNGKey(0)
    kx, kw, kb = jax.random.split(key, 3)

    B, C, H, W = 2, 32, 16, 16
    x = jax.random.normal(kx, (B, C, H, W), jnp.float32)
    params = {
        "w": jax.random.normal(kw, (C, C, 3, 3), jnp.float32) * 0.05,
        "b": jax.random.normal(kb, (C,), jnp.float32) * 0.01,
    }

    # with_conv=True path (pad + 3x3 stride-2 conv)
    out_conv = jax.block_until_ready(downsample(x, params, with_conv=True))
    ref_conv = downsample_ref(x, params, with_conv=True)
    assert out_conv.shape == (B, C, H // 2, W // 2)
    assert jnp.allclose(out_conv, ref_conv, atol=1e-3, rtol=1e-3), \
        "conv path mismatch vs reference"

    # with_conv=False path (2x2 average pooling)
    out_pool = jax.block_until_ready(downsample(x, params, with_conv=False))
    ref_pool = downsample_ref(x, params, with_conv=False)
    assert out_pool.shape == (B, C, H // 2, W // 2)
    assert jnp.allclose(out_pool, ref_pool, atol=1e-5, rtol=1e-5), \
        "avg-pool path mismatch vs reference"

    print("KERNEL_OK")
</pallas_src>

<mosaic_0001>
module attributes {stable_mosaic.version = 11 : i64} {
  func.func @_conv_gemm_kernel(%arg0: i32, %arg1: i32, %arg2: memref<1x288x64xf32, #tpu.memory_space<vmem>>, %arg3: memref<32x288xf32, #tpu.memory_space<vmem>>, %arg4: memref<32x1xf32, #tpu.memory_space<vmem>>, %arg5: memref<1x32x64xf32, #tpu.memory_space<vmem>>) attributes {dimension_semantics = [#tpu.dimension_semantics<parallel>, #tpu.dimension_semantics<parallel>], iteration_bounds = array<i64: 2, 1>, scalar_prefetch = 0 : i64, scratch_operands = 0 : i64, tpu.core_type = #tpu.core_type<tc>, window_params = [{transform_indices = @transform_0, window_bounds = array<i64: 1, 288, 64>}, {pipeline_mode = #tpu.pipeline_mode<synchronous>, transform_indices = @transform_1, window_bounds = array<i64: 32, 288>}, {pipeline_mode = #tpu.pipeline_mode<synchronous>, transform_indices = @transform_2, window_bounds = array<i64: 32, 1>}, {transform_indices = @transform_3, window_bounds = array<i64: 1, 32, 64>}]} {
    %c0 = arith.constant 0 : index
    %c0_0 = arith.constant 0 : index
    %0 = vector.load %arg3[%c0, %c0_0] : memref<32x288xf32, #tpu.memory_space<vmem>>, vector<32x288xf32>
    %c0_1 = arith.constant 0 : index
    %c0_2 = arith.constant 0 : index
    %c0_3 = arith.constant 0 : index
    %1 = vector.load %arg2[%c0_1, %c0_2, %c0_3] : memref<1x288x64xf32, #tpu.memory_space<vmem>>, vector<1x288x64xf32>
    %2 = vector.shape_cast %1 : vector<1x288x64xf32> to vector<288x64xf32>
    %cst = arith.constant dense<0.000000e+00> : vector<32x64xf32>
    %3 = tpu.matmul %0, %2, %cst {dimension_numbers = #tpu.dot_dimension_numbers<[1], [0], [0], [1], [0, 0, 1, 1], [], []>} : vector<32x288xf32>, vector<288x64xf32>, vector<32x64xf32> -> vector<32x64xf32>
    %c0_4 = arith.constant 0 : index
    %c0_5 = arith.constant 0 : index
    %4 = vector.load %arg4[%c0_4, %c0_5] : memref<32x1xf32, #tpu.memory_space<vmem>>, vector<32x1xf32>
    %5 = vector.broadcast %4 : vector<32x1xf32> to vector<32x64xf32>
    %6 = arith.addf %3, %5 : vector<32x64xf32>
    %c0_6 = arith.constant 0 : index
    %c0_7 = arith.constant 0 : index
    %c0_8 = arith.constant 0 : index
    %7 = vector.load %arg5[%c0_6, %c0_7, %c0_8] : memref<1x32x64xf32, #tpu.memory_space<vmem>>, vector<1x32x64xf32>
    %8 = vector.shape_cast %7 : vector<1x32x64xf32> to vector<32x64xf32>
    %9 = vector.shape_cast %6 : vector<32x64xf32> to vector<1x32x64xf32>
    tpu.vector_store %arg5[%c0_6, %c0_7, %c0_8], %9 {strides = array<i32>} : memref<1x32x64xf32, #tpu.memory_space<vmem>>, vector<1x32x64xf32>,
    return
  }
  func.func @transform_0(%arg0: i32, %arg1: i32) -> (i32, i32, i32) {
    %c0_i32 = arith.constant 0 : i32
    %c0_i32_0 = arith.constant 0 : i32
    return %arg0, %c0_i32, %arg1 : i32, i32, i32
  }
  func.func @transform_1(%arg0: i32, %arg1: i32) -> (i32, i32) {
    %c0_i32 = arith.constant 0 : i32
    %c0_i32_0 = arith.constant 0 : i32
    %c0_i32_1 = arith.constant 0 : i32
    return %c0_i32, %c0_i32_0 : i32, i32
  }
  func.func @transform_2(%arg0: i32, %arg1: i32) -> (i32, i32) {
    %c0_i32 = arith.constant 0 : i32
    %c0_i32_0 = arith.constant 0 : i32
    %c0_i32_1 = arith.constant 0 : i32
    return %c0_i32, %c0_i32_0 : i32, i32
  }
  func.func @transform_3(%arg0: i32, %arg1: i32) -> (i32, i32, i32) {
    %c0_i32 = arith.constant 0 : i32
    %c0_i32_0 = arith.constant 0 : i32
    return %arg0, %c0_i32, %arg1 : i32, i32, i32
  }
}

</mosaic_0001>

<llo_original>
// kernel: tpu_custom_call.1
$region0: #{tpu_custom_call.1}
  #allocation0 [shape = 'u32[]', space=smem, size = 0x4, offset = 0x4, fixed_abs, tag = 'smem constant byte address 0x4 - core index']
  #allocation1 [shape = 'u32[144,128]{1,0:T(1,128)}', space=vmem, size = 0x12000, scoped, tag = 'internal scratch']
  %s0 = inlined_call_operand.vmem [shape: f32[2,288,64], index: 0, kind: input, shape index: {}]
  %s1 = inlined_call_operand.vmem [shape: f32[32,288], index: 1, kind: input, shape index: {}]
  %s2 = inlined_call_operand.vmem [shape: f32[32,1], index: 2, kind: input, shape index: {}]
  %s3 = inlined_call_operand.hbm [shape: f32[2,32,64], index: 3, kind: output, shape index: {}]
  %s4 = sld [smem:[#allocation0]]
  $region45: #{tpu_custom_call.1} parent=0
    _
  %s6 = ssub.s32 1, %s4
  %s7 = scalar_select 0, %s6, %s4
  $region1: #{tpu_custom_call.1} parent=0
    #allocation2 [shape = 'u8[32768]{0}', space=vmem, size = 0x8000, scoped, tag = 'output window, operand 0']
    #allocation3 [shape = 's32[2]{0}', space=sflag, size = 0x8, scoped, tag = 'scoped memory for tpu_custom_call.1']
    %8 = vsyncpa [#allocation3], 0
    %s9 = scalar_lea.sflag [#allocation3], 1
    %10 = vsyncpa %s9, 0
    loop: start=0, step=1, limit=4
    $region2: #{tpu_custom_call.1} parent=1 // loop_pre_header
      _
    $region3: #{tpu_custom_call.1} parent=1 // loop_header
      %s12 = sphi 0, %s16
      %p13 = scmp.ge.s32.totalorder %s12, 4
      %s19 = sphi 0, %s31
      %s20 = sphi 0, %s27
      %s21 = sphi 0, %s19
      %s22 = sphi 0, %s20
      %s23 = sphi 0, %s21
      %s24 = sphi 0, %s22
      %s36 = sphi 0, %s38
      %s39 = sphi 0, %s36
      %s40 = sphi 0, %s39
      %s56 = sphi 0, %s40
      %s60 = sphi 0, %s60
      %s62 = sphi 0, %s60
      %s63 = sphi 0, %s62
      %s77 = sphi 0, %s63
      %s81 = sphi 0, %s81
      %s83 = sphi 0, %s81
      %s84 = sphi 0, %s83
      %s98 = sphi 0, %s84
      %s106 = sphi 0, %s108
      %s109 = sphi 0, %s106
      %s110 = sphi 0, %s109
      %s126 = sphi 0, %s110
    $region4: #{tpu_custom_call.1} parent=1 // loop_header_branch
      %15 = sbr.rel (%p13) target = $region8
    $region5: #{tpu_custom_call.1} parent=1 // loop_body
      %s17 = ssub.s32 %s12, 1
      %s18 = ssub.s32 %s12, 2
      %s25 = sadd.s32 1, %s20
      %p26 = scmp.ge.s32.totalorder %s25, 1
      %s27 = scalar_select %p26, 0, %s25
      %s28 = sadd.s32 1, %s19
      %s29 = scalar_select %p26, %s28, %s19
      %p30 = scmp.ge.s32.totalorder %s29, 2
      %s31 = scalar_select %p30, 0, %s29
      %s32 = ssub.s32 %s19, %s31
      %s33 = ssub.s32 %s20, %s27
      %s34 = sor.u32 %s32, %s33
      %p35 = scmp.eq.s32.totalorder %s34, 0
      %s37 = sadd.s32 %s36, 1
      %s38 = scalar_select %p35, %s36, %s37
      %p41 = pneg %p35
      %p42 = scmp.eq.s32.totalorder %s12, 1
      %p43 = por %p41, %p42
      %p44 = scmp.ne.s32.totalorder %s36, %s39
      %p45 = scmp.eq.s32.totalorder %s12, 0
      %p46 = por %p44, %p45
      %p47 = scmp.ne.s32.totalorder %s36, %s39
      %p48 = scmp.eq.s32.totalorder %s17, 1
      %p49 = por %p47, %p48
      %p50 = scmp.ne.s32.totalorder %s39, %s40
      %p51 = scmp.eq.s32.totalorder %s17, 0
      %p52 = por %p50, %p51
      %p53 = scmp.ne.s32.totalorder %s39, %s40
      %p54 = scmp.eq.s32.totalorder %s18, 1
      %p55 = por %p53, %p54
      %p57 = scmp.ne.s32.totalorder %s40, %s56
      %p58 = scmp.eq.s32.totalorder %s18, 0
      %p59 = por %p57, %p58
      %s61 = sadd.s32 %s60, 1
      %p64 = scmp.eq.s32.totalorder %s12, 1
      %p65 = scmp.ne.s32.totalorder %s60, %s62
      %p66 = scmp.eq.s32.totalorder %s12, 0
      %p67 = por %p65, %p66
      %p68 = scmp.ne.s32.totalorder %s60, %s62
      %p69 = scmp.eq.s32.totalorder %s17, 1
      %p70 = por %p68, %p69
      %p71 = scmp.ne.s32.totalorder %s62, %s63
      %p72 = scmp.eq.s32.totalorder %s17, 0
      %p73 = por %p71, %p72
      %p74 = scmp.ne.s32.totalorder %s62, %s63
      %p75 = scmp.eq.s32.totalorder %s18, 1
      %p76 = por %p74, %p75
      %p78 = scmp.ne.s32.totalorder %s63, %s77
      %p79 = scmp.eq.s32.totalorder %s18, 0
      %p80 = por %p78, %p79
      %s82 = sadd.s32 %s81, 1
      %p85 = scmp.eq.s32.totalorder %s12, 1
      %p86 = scmp.ne.s32.totalorder %s81, %s83
      %p87 = scmp.eq.s32.totalorder %s12, 0
      %p88 = por %p86, %p87
      %p89 = scmp.ne.s32.totalorder %s81, %s83
      %p90 = scmp.eq.s32.totalorder %s17, 1
      %p91 = por %p89, %p90
      %p92 = scmp.ne.s32.totalorder %s83, %s84
      %p93 = scmp.eq.s32.totalorder %s17, 0
      %p94 = por %p92, %p93
      %p95 = scmp.ne.s32.totalorder %s83, %s84
      %p96 = scmp.eq.s32.totalorder %s18, 1
      %p97 = por %p95, %p96
      %p99 = scmp.ne.s32.totalorder %s84, %s98
      %p100 = scmp.eq.s32.totalorder %s18, 0
      %p101 = por %p99, %p100
      %s102 = ssub.s32 %s19, %s31
      %s103 = ssub.s32 %s20, %s27
      %s104 = sor.u32 %s102, %s103
      %p105 = scmp.eq.s32.totalorder %s104, 0
      %s107 = sadd.s32 %s106, 1
      %s108 = scalar_select %p105, %s106, %s107
      %p111 = pneg %p105
      %p112 = scmp.eq.s32.totalorder %s12, 1
      %p113 = por %p111, %p112
      %p114 = scmp.ne.s32.totalorder %s106, %s109
      %p115 = scmp.eq.s32.totalorder %s12, 0
      %p116 = por %p114, %p115
      %p117 = scmp.ne.s32.totalorder %s106, %s109
      %p118 = scmp.eq.s32.totalorder %s17, 1
      %p119 = por %p117, %p118
      %p120 = scmp.ne.s32.totalorder %s109, %s110
      %p121 = scmp.eq.s32.totalorder %s17, 0
      %p122 = por %p120, %p121
      %p123 = scmp.ne.s32.totalorder %s109, %s110
      %p124 = scmp.eq.s32.totalorder %s18, 1
      %p125 = por %p123, %p124
      %p127 = scmp.ne.s32.totalorder %s110, %s126
      %p128 = scmp.eq.s32.totalorder %s18, 0
      %p129 = por %p127, %p128
      %p130 = scmp.le.s32.totalorder 1, %s12
      %p131 = scmp.lt.s32.totalorder %s12, 3
      %p132 = pnand %p130, %p131
      %p133 = pneg %p132
      // Predicated region
      $region9: #{tpu_custom_call.1} parent=5 // pred_check
        _
      $region10: #{tpu_custom_call.1} parent=5 // pred_check_branch
        %135 = sbr.rel (%p132) target = $region12
      $region11: #{tpu_custom_call.1} parent=5 // pred_region
        %s136 = ssub.s32 %s12, 1
        // Predicated region
        $region13: #{tpu_custom_call.1} parent=11 // pred_check
          %p137 = pneg %p73
        $region14: #{tpu_custom_call.1} parent=11 // pred_check_branch
          %139 = sbr.rel (%p137) target = $region16
        $region15: #{tpu_custom_call.1} parent=11 // pred_region
          _
        $region16: #{tpu_custom_call.1} parent=11 // pred_fallthru
          _
        // Predicated region
        $region17: #{tpu_custom_call.1} parent=11 // pred_check
          %p140 = pneg %p94
        $region18: #{tpu_custom_call.1} parent=11 // pred_check_branch
          %142 = sbr.rel (%p140) target = $region20
        $region19: #{tpu_custom_call.1} parent=11 // pred_region
          _
        $region20: #{tpu_custom_call.1} parent=11 // pred_fallthru
          _
      $region12: #{tpu_custom_call.1} parent=5 // pred_fallthru
        _
      %p143 = scmp.lt.s32.totalorder %s12, 2
      // Predicated region
      $region21: #{tpu_custom_call.1} parent=5 // pred_check
        %p144 = pneg %p143
      $region22: #{tpu_custom_call.1} parent=5 // pred_check_branch
        %146 = sbr.rel (%p144) target = $region24
      $region23: #{tpu_custom_call.1} parent=5 // pred_region
        // Predicated region
        $region25: #{tpu_custom_call.1} parent=23 // pred_check
          %p147 = pneg %p46
        $region26: #{tpu_custom_call.1} parent=23 // pred_check_branch
          %149 = sbr.rel (%p147) target = $region28
        $region27: #{tpu_custom_call.1} parent=23 // pred_region
          %p150 = scmp.lt.s32.totalorder %s19, 1
          %s151 = scalar_select %p150, %s19, 1
          %p152 = scmp.lt.s32.totalorder %s20, 0
          %s153 = scalar_select %p152, %s20, 0
          %s154 = smul.addr %s151, 36
          %s155 = sadd.s32 %s153, %s154
          %s156 = smul.addr %s155, 8
          %s157 = scalar_lea.vmem %s0, %s156
        $region28: #{tpu_custom_call.1} parent=23 // pred_fallthru
          _
      $region24: #{tpu_custom_call.1} parent=5 // pred_fallthru
        _
      %p158 = scmp.le.s32.totalorder 1, %s12
      %p159 = scmp.lt.s32.totalorder %s12, 3
      %p160 = pnand %p158, %p159
      %p161 = pneg %p160
      // Predicated region
      $region29: #{tpu_custom_call.1} parent=5 // pred_check
        _
      $region30: #{tpu_custom_call.1} parent=5 // pred_check_branch
        %163 = sbr.rel (%p160) target = $region32
      $region31: #{tpu_custom_call.1} parent=5 // pred_region
        %s164 = ssub.s32 %s12, 1
        %p165 = scmp.lt.s32.totalorder %s21, 1
        %s166 = scalar_select %p165, %s21, 1
        %p167 = scmp.lt.s32.totalorder %s22, 0
        %s168 = scalar_select %p167, %s22, 0
        %s169 = smul.addr %s166, 36
        %s170 = sadd.s32 %s168, %s169
        %s171 = smul.addr %s170, 8
        %s172 = scalar_lea.vmem %s0, %s171
        %p173 = pneg %p52
        %p174 = pneg %p49
        %p175 = pneg %p73
        %p176 = pneg %p70
        %p177 = pneg %p94
        %p178 = pneg %p91
        %p179 = pneg %p122
        %p180 = pneg %p119
        %s181 = sand.u32 %s109, 1
        %s182 = scalar_lea.sflag [#allocation3], %s181
        %s183 = sand.u32 %s109, 1
        %s184 = smul.addr %s183, 32
        %s185 = scalar_lea.vmem [#allocation2], %s184
        %p186 = scmp.lt.s32.totalorder %s21, 1
        %s187 = scalar_select %p186, %s21, 1
        %p188 = scmp.lt.s32.totalorder %s22, 0
        %s189 = scalar_select %p188, %s22, 0
        %s190 = smul.addr %s187, 36
        %s191 = sadd.s32 %s189, %s190
        %s192 = smul.addr %s191, 8
        %s193 = scalar_lea.vmem %s0, %s192
        %v194 = vld [vmem:[%s1] sm:$0xff]
        %v195 = vld [vmem:[%s1 + $0x8] sm:$0xff]
        %v196 = vld [vmem:[%s1 + $0x10] sm:$0xff]
        %v197 = vld [vmem:[%s1 + $0x18] sm:$0xff]
        %v198 = vld [vmem:[%s1 + $0x20] sm:$0xff]
        %v199 = vld [vmem:[%s1 + $0x28] sm:$0xff]
        %v200 = vld [vmem:[%s1 + $0x30] sm:$0xff]
        %v201 = vld [vmem:[%s1 + $0x38] sm:$0xff]
        %v202 = vld [vmem:[%s1 + $0x40] sm:$0xff]
        %v203 = vld [vmem:[%s1 + $0x48] sm:$0xff]
        %v204 = vld [vmem:[%s1 + $0x50] sm:$0xff]
        %v205 = vld [vmem:[%s1 + $0x58] sm:$0xff]
        %v206 = vld [vmem:[%s193] sm:$0xff]
        %v207 = vld [vmem:[%s193 + $0x8] sm:$0xff]
        %v208 = vld [vmem:[%s193 + $0x10] sm:$0xff]
        %v209 = vld [vmem:[%s193 + $0x18] sm:$0xff]
        %v210 = vld [vmem:[%s193 + $0x20] sm:$0xff]
        %v211 = vld [vmem:[%s193 + $0x28] sm:$0xff]
        %v212 = vld [vmem:[%s193 + $0x30] sm:$0xff]
        %v213 = vld [vmem:[%s193 + $0x38] sm:$0xff]
        %v214 = vld [vmem:[%s193 + $0x40] sm:$0xff]
        %v215 = vld [vmem:[%s193 + $0x48] sm:$0xff]
        %v216 = vld [vmem:[%s193 + $0x50] sm:$0xff]
        %v217 = vld [vmem:[%s193 + $0x58] sm:$0xff]
        %v218 = vld [vmem:[%s193 + $0x60] sm:$0xff]
        %v219 = vld [vmem:[%s193 + $0x68] sm:$0xff]
        %v220 = vld [vmem:[%s193 + $0x70] sm:$0xff]
        %v221 = vld [vmem:[%s193 + $0x78] sm:$0xff]
        %v222 = vld [vmem:[%s193 + $0x80] sm:$0xff]
        %v223 = vld [vmem:[%s193 + $0x88] sm:$0xff]
        %v224 = vld [vmem:[%s193 + $0x90] sm:$0xff]
        %v225 = vld [vmem:[%s193 + $0x98] sm:$0xff]
        %v226 = vld [vmem:[%s193 + $0xa0] sm:$0xff]
        %v227 = vld [vmem:[%s193 + $0xa8] sm:$0xff]
        %v228 = vld [vmem:[%s193 + $0xb0] sm:$0xff]
        %v229 = vld [vmem:[%s193 + $0xb8] sm:$0xff]
        %v230 = vld [vmem:[%s193 + $0xc0] sm:$0xff]
        %v231 = vld [vmem:[%s193 + $0xc8] sm:$0xff]
        %v232 = vld [vmem:[%s193 + $0xd0] sm:$0xff]
        %v233 = vld [vmem:[%s193 + $0xd8] sm:$0xff]
        %v234 = vld [vmem:[%s193 + $0xe0] sm:$0xff]
        %v235 = vld [vmem:[%s193 + $0xe8] sm:$0xff]
        %v236 = vld [vmem:[%s193 + $0xf0] sm:$0xff]
        %v237 = vld [vmem:[%s193 + $0xf8] sm:$0xff]
        %v238 = vld [vmem:[%s193 + $0x100] sm:$0xff]
        %v239 = vld [vmem:[%s193 + $0x108] sm:$0xff]
        %v240 = vld [vmem:[%s193 + $0x110] sm:$0xff]
        %v241 = vld [vmem:[%s193 + $0x118] sm:$0xff]
        %v242 = vld [vmem:[%s2] sm:$0xff]
        %v243 = vld [vmem:[%s2 + $0x8] sm:$0xff]
        %v244 = vld [vmem:[%s2 + $0x10] sm:$0xff]
        %v245 = vld [vmem:[%s2 + $0x18] sm:$0xff]
        %247 = vset.pattern.permute.xlu0 0
        %248 = vperm.xlu0 %247, %v242
        %v249 = vpop.permute.xlu0 %248
        %252 = vset.pattern.permute.xlu0 0
        %253 = vperm.xlu0 %252, %v243
        %v254 = vpop.permute.xlu0 %253
        %257 = vset.pattern.permute.xlu0 0
        %258 = vperm.xlu0 %257, %v244
        %v259 = vpop.permute.xlu0 %258
        %262 = vset.pattern.permute.xlu0 0
        %263 = vperm.xlu0 %262, %v245
        %v264 = vpop.permute.xlu0 %263
        %vm266 = vcmask 261120
        %v268 = vsel %vm266, %v196, 0
        %v271 = vsel %vm266, %v199, 0
        %v274 = vsel %vm266, %v202, 0
        %v277 = vsel %vm266, %v205, 0
        %279 = vmatprep.subr.mxu0 0.0
        %280 = vmatpush1.msra.mxu0 %v206
        %281 = vmatprep.subr.mxu0 0.0
        %282 = vmatpush1.msra.mxu0 %v207
        %283 = vmatprep.subr.mxu0 0.0
        %284 = vmatpush1.msra.mxu0 %v208
        %285 = vmatprep.subr.mxu0 0.0
        %286 = vmatpush1.msra.mxu0 %v209
        %287 = vmatprep.subr.mxu0 0.0
        %288 = vmatpush1.msra.mxu0 %v210
        %289 = vmatprep.subr.mxu0 0.0
        %290 = vmatpush1.msra.mxu0 %v211
        %291 = vmatprep.subr.mxu0 0.0
        %292 = vmatpush1.msra.mxu0 %v212
        %293 = vmatprep.subr.mxu0 0.0
        %294 = vmatpush1.msra.mxu0 %v213
        %295 = vmatprep.subr.mxu0 0.0
        %296 = vmatpush1.msra.mxu0 %v214
        %297 = vmatprep.subr.mxu0 0.0
        %298 = vmatpush1.msra.mxu0 %v215
        %299 = vmatprep.subr.mxu0 0.0
        %300 = vmatpush1.msra.mxu0 %v216
        %301 = vmatprep.subr.mxu0 0.0
        %302 = vmatpush1.msra.mxu0 %v217
        %303 = vmatprep.subr.mxu0 0.0
        %304 = vmatpush1.msra.mxu0 %v218
        %305 = vmatprep.subr.mxu0 0.0
        %306 = vmatpush1.msra.mxu0 %v219
        %307 = vmatprep.subr.mxu0 0.0
        %308 = vmatpush1.msra.mxu0 %v220
        %309 = vmatprep.subr.mxu0 0.0
        %310 = vmatpush1.msra.mxu0 %v221
        %311 = vmatprep.subr.mxu0 0.0
        %312 = vmatpush1.msra.mxu0 %v222
        %313 = vmatprep.subr.mxu0 0.0
        %314 = vmatpush1.msra.mxu0 %v223
        %315 = vmatprep.subr.mxu0 0.0
        %316 = vmatpush1.msra.mxu0 %v224
        %317 = vmatprep.subr.mxu0 0.0
        %318 = vmatpush1.msra.mxu0 %v225
        %319 = vmatprep.subr.mxu0 0.0
        %320 = vmatpush1.msra.mxu0 %v226
        %321 = vmatprep.subr.mxu0 0.0
        %322 = vmatpush1.msra.mxu0 %v227
        %323 = vmatprep.subr.mxu0 0.0
        %324 = vmatpush1.msra.mxu0 %v228
        %325 = vmatprep.subr.mxu0 0.0
        %326 = vmatpush1.msra.mxu0 %v229
        %327 = vmatprep.subr.mxu0 0.0
        %328 = vmatpush1.msra.mxu0 %v230
        %329 = vmatprep.subr.mxu0 0.0
        %330 = vmatpush1.msra.mxu0 %v231
        %331 = vmatprep.subr.mxu0 0.0
        %332 = vmatpush1.msra.mxu0 %v232
        %333 = vmatprep.subr.mxu0 0.0
        %334 = vmatpush1.msra.mxu0 %v233
        %335 = vmatprep.subr.mxu0 0.0
        %336 = vmatpush1.msra.mxu0 %v234
        %337 = vmatprep.subr.mxu0 0.0
        %338 = vmatpush1.msra.mxu0 %v235
        %339 = vmatprep.subr.mxu0 0.0
        %340 = vmatpush1.msra.mxu0 %v236
        %341 = vmatprep.subr.mxu0 0.0
        %342 = vmatpush1.msra.mxu0 %v237
        %343 = vmatprep.mubr.f32.mxu0 %v195
        %344 = vmatmul.mubr.f32.gmra.mrb[0].mxu0 %v194
        %v345 = vpop.f32.mrb[0].mxu0
        %v346 = vadd.f32 %v249, %v345
        %v347 = vpop.f32.mrb[0].mxu0
        %348 = vmatprep.mubr.f32.mxu0 %v198
        %349 = vmatmul.mubr.f32.gmra.mrb[0].mxu0 %v197
        %v350 = vpop.f32.mrb[0].mxu0
        %v351 = vadd.f32 %v254, %v350
        %v352 = vpop.f32.mrb[0].mxu0
        %353 = vmatprep.mubr.f32.mxu0 %v201
        %354 = vmatmul.mubr.f32.gmra.mrb[0].mxu0 %v200
        %v355 = vpop.f32.mrb[0].mxu0
        %v356 = vadd.f32 %v259, %v355
        %v357 = vpop.f32.mrb[0].mxu0
        %358 = vmatprep.mubr.f32.mxu0 %v204
        %359 = vmatmul.mubr.f32.gmra.mrb[0].mxu0 %v203
        %v360 = vpop.f32.mrb[0].mxu0
        %v361 = vadd.f32 %v264, %v360
        %v362 = vpop.f32.mrb[0].mxu0
        %363 = vdwg.mxu0
        %364 = vmatprep.subr.mxu0 0.0
        %365 = vmatpush1.msra.mxu0 %v238
        %366 = vmatprep.subr.mxu0 0.0
        %367 = vmatpush1.msra.mxu0 %v239
        %368 = vmatprep.subr.mxu0 0.0
        %369 = vmatpush1.msra.mxu0 %v240
        %370 = vmatprep.subr.mxu0 0.0
        %371 = vmatpush1.msra.mxu0 %v241
        %372 = vmatprep.subr.mxu0 0.0
        %373 = vmatpush1.msra.mxu0 0.0
        %374 = vmatprep.subr.mxu0 0.0
        %375 = vmatpush1.msra.mxu0 0.0
        %376 = vmatprep.subr.mxu0 0.0
        %377 = vmatpush1.msra.mxu0 0.0
        %378 = vmatprep.subr.mxu0 0.0
        %379 = vmatpush1.msra.mxu0 0.0
        %380 = vmatprep.subr.mxu0 0.0
        %381 = vmatpush1.msra.mxu0 0.0
        %382 = vmatprep.subr.mxu0 0.0
        %383 = vmatpush1.msra.mxu0 0.0
        %384 = vmatprep.subr.mxu0 0.0
        %385 = vmatpush1.msra.mxu0 0.0
        %386 = vmatprep.subr.mxu0 0.0
        %387 = vmatpush1.msra.mxu0 0.0
        %388 = vmatprep.subr.mxu0 0.0
        %389 = vmatpush1.msra.mxu0 0.0
        %390 = vmatprep.subr.mxu0 0.0
        %391 = vmatpush1.msra.mxu0 0.0
        %392 = vmatprep.subr.mxu0 0.0
        %393 = vmatpush1.msra.mxu0 0.0
        %394 = vmatprep.subr.mxu0 0.0
        %395 = vmatpush1.msra.mxu0 0.0
        %396 = vmatprep.subr.mxu0 0.0
        %397 = vmatpush1.msra.mxu0 0.0
        %398 = vmatprep.subr.mxu0 0.0
        %399 = vmatpush1.msra.mxu0 0.0
        %400 = vmatprep.subr.mxu0 0.0
        %401 = vmatpush1.msra.mxu0 0.0
        %402 = vmatprep.subr.mxu0 0.0
        %403 = vmatpush1.msra.mxu0 0.0
        %404 = vmatprep.subr.mxu0 0.0
        %405 = vmatpush1.msra.mxu0 0.0
        %406 = vmatprep.subr.mxu0 0.0
        %407 = vmatpush1.msra.mxu0 0.0
        %408 = vmatprep.subr.mxu0 0.0
        %409 = vmatpush1.msra.mxu0 0.0
        %410 = vmatprep.subr.mxu0 0.0
        %411 = vmatpush1.msra.mxu0 0.0
        %412 = vmatprep.subr.mxu0 0.0
        %413 = vmatpush1.msra.mxu0 0.0
        %414 = vmatprep.subr.mxu0 0.0
        %415 = vmatpush1.msra.mxu0 0.0
        %416 = vmatprep.subr.mxu0 0.0
        %417 = vmatpush1.msra.mxu0 0.0
        %418 = vmatprep.subr.mxu0 0.0
        %419 = vmatpush1.msra.mxu0 0.0
        %420 = vmatprep.subr.mxu0 0.0
        %421 = vmatpush1.msra.mxu0 0.0
        %422 = vmatprep.subr.mxu0 0.0
        %423 = vmatpush1.msra.mxu0 0.0
        %424 = vmatprep.subr.mxu0 0.0
        %425 = vmatpush1.msra.mxu0 0.0
        %426 = vmatprep.subr.mxu0 0.0
        %427 = vmatpush1.msra.mxu0 0.0
        %428 = vmatprep.mubr.f32.mxu0 0.0
        %429 = vmatmul.mubr.f32.gmra.mrb[0].mxu0 %v268
        %v430 = vpop.f32.mrb[0].mxu0
        %v431 = vadd.f32 %v346, %v430
        %v432 = vpop.f32.mrb[0].mxu0
        %433 = vmatprep.mubr.f32.mxu0 0.0
        %434 = vmatmul.mubr.f32.gmra.mrb[0].mxu0 %v271
        %v435 = vpop.f32.mrb[0].mxu0
        %v436 = vadd.f32 %v351, %v435
        %v437 = vpop.f32.mrb[0].mxu0
        %438 = vmatprep.mubr.f32.mxu0 0.0
        %439 = vmatmul.mubr.f32.gmra.mrb[0].mxu0 %v274
        %v440 = vpop.f32.mrb[0].mxu0
        %v441 = vadd.f32 %v356, %v440
        %v442 = vpop.f32.mrb[0].mxu0
        %443 = vmatprep.mubr.f32.mxu0 0.0
        %444 = vmatmul.mubr.f32.gmra.mrb[0].mxu0 %v277
        %v445 = vpop.f32.mrb[0].mxu0
        %v446 = vadd.f32 %v361, %v445
        %v447 = vpop.f32.mrb[0].mxu0
        %448 = vdwg.mxu0
        %vm449 = vcmask 523264
        %450 = vst.msk [vmem:[%s185] sm:$0xff] %vm449, %v431
        %451 = vst.msk [vmem:[%s185 + $0x8] sm:$0xff] %vm449, %v436
        %452 = vst.msk [vmem:[%s185 + $0x10] sm:$0xff] %vm449, %v441
        %453 = vst.msk [vmem:[%s185 + $0x18] sm:$0xff] %vm449, %v446
        %s454 = sand.u32 %s109, 1
        %s455 = scalar_lea.sflag [#allocation3], %s454
        %s456 = sand.u32 %s109, 1
        %s457 = smul.addr %s456, 32
        %s458 = scalar_lea.vmem [#allocation2], %s457
        // Predicated region
        $region33: #{tpu_custom_call.1} parent=31 // pred_check
          %p459 = pneg %p119
        $region34: #{tpu_custom_call.1} parent=31 // pred_check_branch
          %461 = sbr.rel (%p459) target = $region36
        $region35: #{tpu_custom_call.1} parent=31 // pred_region
          %s463 = ssub.s32 512, 512
          %464 = vsyncadd %s455, %s463
          %s465 = smul.addr %s21, 4
          %s466 = sadd.s32 %s22, %s465
          %s467 = smul.addr %s466, 128
          %s468 = scalar_lea.hbm %s3, %s467
          %s469 = sshll.u32 %s458, 4
          %s470 = int_to_ptr.vmem [resolvable:$true] %s469
          %475 = dma.vmem_to_hbm [thread:$0]  %s470, 512, %s468, %s455, 128, 128, 8
        $region36: #{tpu_custom_call.1} parent=31 // pred_fallthru
          _
      $region32: #{tpu_custom_call.1} parent=5 // pred_fallthru
        _
      %p476 = scmp.le.s32.totalorder 2, %s12
      // Predicated region
      $region37: #{tpu_custom_call.1} parent=5 // pred_check
        %p477 = pneg %p476
      $region38: #{tpu_custom_call.1} parent=5 // pred_check_branch
        %479 = sbr.rel (%p477) target = $region40
      $region39: #{tpu_custom_call.1} parent=5 // pred_region
        %s480 = ssub.s32 %s12, 2
        // Predicated region
        $region41: #{tpu_custom_call.1} parent=39 // pred_check
          %p481 = pneg %p125
        $region42: #{tpu_custom_call.1} parent=39 // pred_check_branch
          %483 = sbr.rel (%p481) target = $region44
        $region43: #{tpu_custom_call.1} parent=39 // pred_region
          %s484 = sand.u32 %s110, 1
          %s485 = scalar_lea.sflag [#allocation3], %s484
          %s486 = sand.u32 %s110, 1
          %s487 = smul.addr %s486, 32
          %s488 = scalar_lea.vmem [#allocation2], %s487
          %489 = dma.done %s485, 512
        $region44: #{tpu_custom_call.1} parent=39 // pred_fallthru
          _
      $region40: #{tpu_custom_call.1} parent=5 // pred_fallthru
        _
    $region6: #{tpu_custom_call.1} parent=1 // loop_footer
      %s16 = sadd.s32 1, %s12
    $region7: #{tpu_custom_call.1} parent=1 // loop_footer_branch
      %11 = sbr.rel target = $region3
    $region8: #{tpu_custom_call.1} parent=1 // loop_exit
      _
    %490 = vsyncpa [#allocation3], 1
    %s491 = scalar_lea.sflag [#allocation3], 1
    %492 = vsyncpa %s491, 1

</llo_original>
